<compile_context>
chip_gen: v5e
topology: v5e:2x2
jax: 0.10.0
libtpu: 0.0.40
codegen_flags: <defaults>
</compile_context>

<pallas_src>
import jax
import jax.numpy as jnp
from jax import lax
from jax.experimental import pallas as pl
from jax.experimental.pallas import tpu as pltpu


def _round_up(x, m):
    return ((x + m - 1) // m) * m


def _vmem_capacity_bytes():
    """Physical per-TensorCore VMEM, queried from the backend when possible."""
    try:
        info = pltpu.get_tpu_info()
        cap = getattr(info, "vmem_capacity_bytes", None)
        if cap:
            return int(cap)
    except Exception:
        pass
    return 64 << 20  # conservative default: v7x has 64 MiB per TensorCore


# ---------------------------------------------------------------------------
# Path A: table resident in VMEM, exact one-hot MXU gather.
# ---------------------------------------------------------------------------
def _embedding_onehot_kernel(ids_ref, table_ref, out_ref):
    # ids_ref:   (T, 1) int32 token ids for this tile        (VMEM)
    # table_ref: (V, E) full embedding table                 (VMEM, resident)
    # out_ref:   (T, E) output tile                          (VMEM)
    T = out_ref.shape[0]
    V = table_ref.shape[0]
    ids = ids_ref[...]                                       # (T, 1)
    vocab_iota = lax.broadcasted_iota(jnp.int32, (T, V), 1)  # (T, V)
    table = table_ref[...]
    one_hot = (ids == vocab_iota).astype(table.dtype)        # exact 0/1
    # Exactly one non-zero term per output element + HIGHEST precision => the
    # dot is an exact row gather even for float32 tables.
    out_ref[...] = jnp.dot(
        one_hot,
        table,
        preferred_element_type=jnp.float32,
        precision=lax.Precision.HIGHEST,
    ).astype(out_ref.dtype)


def _embedding_onehot(ids_padded, table, *, T, n_tiles, vmem_limit):
    n_pad = ids_padded.shape[0]
    V, E = table.shape
    return pl.pallas_call(
        _embedding_onehot_kernel,
        out_shape=jax.ShapeDtypeStruct((n_pad, E), table.dtype),
        grid_spec=pltpu.PrefetchScalarGridSpec(
            num_scalar_prefetch=0,
            grid=(n_tiles,),
            in_specs=[
                # (T, 1) tile of token ids per grid step.
                pl.BlockSpec((T, 1), lambda i: (i, 0)),
                # Full table, same block every step -> logically resident.
                # Buffered(1) keeps a single physical copy (default pipelining
                # would allocate 2x table_bytes).
                pl.BlockSpec((V, E), lambda i: (0, 0),
                             pipeline_mode=pl.Buffered(1)),
            ],
            out_specs=pl.BlockSpec((T, E), lambda i: (i, 0)),
        ),
        compiler_params=pltpu.CompilerParams(
            dimension_semantics=("parallel",),   # token tiles are independent
            vmem_limit_bytes=vmem_limit,
        ),
    )(ids_padded.reshape(n_pad, 1), table)


# ---------------------------------------------------------------------------
# Path B: tiled manual-DMA row gather, double-buffered (table stays in HBM).
# ---------------------------------------------------------------------------
def _embedding_dma_gather_kernel(ids_smem, table_hbm, out_ref, buf, sems):
    # ids_smem:  (n_pad,)   int32 token ids             (SMEM, scalar prefetch)
    # table_hbm: (V, E)     embedding table             (HBM, manual DMA)
    # out_ref:   (T, E)     output tile                 (VMEM)
    # buf:       (2, T, E)  double buffer               (VMEM scratch)
    # sems:      (2, T)     per-row DMA semaphores
    T = out_ref.shape[0]
    i = pl.program_id(0)
    n_tiles = pl.num_programs(0)
    slot = lax.rem(i, 2)

    def start_tile(tile_idx, dst_slot):
        base = tile_idx * T

        def issue(r, carry):
            row = ids_smem[base + r]
            pltpu.make_async_copy(
                table_hbm.at[pl.ds(row, 1), :],
                buf.at[dst_slot, pl.ds(r, 1), :],
                sems.at[dst_slot, r],
            ).start()
            return carry

        lax.fori_loop(0, T, issue, 0)

    # Prime the pipeline on the first step.
    @pl.when(i == 0)
    def _():
        start_tile(0, 0)

    # Prefetch the next tile's rows into the other slot.
    @pl.when(i + 1 < n_tiles)
    def _():
        start_tile(i + 1, 1 - slot)

    # Wait for this tile's rows, then write one dense (T, E) block.
    def wait(r, carry):
        pltpu.make_async_copy(
            table_hbm.at[pl.ds(0, 1), :],          # shape-only (matches start)
            buf.at[slot, pl.ds(r, 1), :],
            sems.at[slot, r],
        ).wait()
        return carry

    lax.fori_loop(0, T, wait, 0)
    out_ref[...] = buf[slot]


def _embedding_dma_gather(ids_padded, table, *, T, n_tiles):
    n_pad = ids_padded.shape[0]
    V, E = table.shape
    return pl.pallas_call(
        _embedding_dma_gather_kernel,
        out_shape=jax.ShapeDtypeStruct((n_pad, E), table.dtype),
        grid_spec=pltpu.PrefetchScalarGridSpec(
            num_scalar_prefetch=1,
            grid=(n_tiles,),
            in_specs=[pl.BlockSpec(memory_space=pl.ANY)],   # table stays in HBM
            out_specs=pl.BlockSpec((T, E), lambda i, ids: (i, 0)),
            scratch_shapes=[
                pltpu.VMEM((2, T, E), table.dtype),
                pltpu.SemaphoreType.DMA((2, T)),
            ],
        ),
        compiler_params=pltpu.CompilerParams(
            # Cross-step double-buffer state => not megacore-splittable.
            dimension_semantics=("arbitrary",),
        ),
    )(ids_padded, table)


# ---------------------------------------------------------------------------
# Wrapper (module forward)
# ---------------------------------------------------------------------------
def word_embedding_forward(seq_ids, embedding_weight, *, token_tile=256,
                           vocab_mxu_threshold=4096):
    """nn.Embedding forward: seq_ids (B, S) int -> (B, S, E) embeddings."""
    B, S = seq_ids.shape
    V, E = embedding_weight.shape
    dtype = embedding_weight.dtype
    itemsize = jnp.dtype(dtype).itemsize
    n_tok = B * S

    # Clamp so a bad id can never drive an out-of-bounds gather DMA.
    # (nn.Embedding raises on out-of-range ids; valid inputs are unaffected.)
    flat_ids = jnp.clip(seq_ids.reshape(n_tok).astype(jnp.int32), 0, V - 1)

    # Sublane packing multiple for the table dtype (f32: 8, bf16: 16, int8: 32).
    sub = {4: 8, 2: 16, 1: 32}.get(itemsize, 8)
    T = _round_up(min(token_tile, _round_up(n_tok, sub)), sub)
    n_pad = _round_up(n_tok, T)
    n_tiles = n_pad // T
    ids_padded = jnp.pad(flat_ids, (0, n_pad - n_tok))   # pad value 0 is in-bounds

    # --- Path selection ------------------------------------------------------
    # VMEM accounting for the resident path: table single-buffered (Buffered(1)),
    # ids/out double-buffered, one-hot + f32 accumulator live in vregs/VMEM.
    # Budget is per-TensorCore (v7x: 64 MiB, v5e/v6e: 128 MiB), queried at trace
    # time instead of hardcoded.
    lanes = 128
    table_bytes = V * E * itemsize
    step_bytes = (
        2 * T * lanes * 4                            # ids blocks (lane-padded)
        + 2 * T * _round_up(E, lanes) * itemsize     # output blocks
        + T * _round_up(V, lanes) * 4                # one-hot
        + T * _round_up(E, lanes) * 4                # f32 accumulator
    )
    vmem_needed = table_bytes + step_bytes + (2 << 20)   # + slack
    vmem_capacity = _vmem_capacity_bytes()
    vmem_budget = vmem_capacity - (8 << 20)

    # The one-hot matmul costs O(n_tok*V*E) MXU flops while the DMA gather only
    # moves O(n_tok*E) bytes, so the MXU path is only used for small vocabularies
    # (crossover is a few K entries: lower on v5e's slow MXU / v7x's fast HBM).
    use_onehot = (
        itemsize >= 2                        # v7x MXU has no integer datapath
        and V <= vocab_mxu_threshold
        and vmem_needed <= vmem_budget
    )

    if use_onehot:
        vmem_limit = int(min(vmem_capacity,
                             max(vmem_needed + (8 << 20), 32 << 20)))
        out_flat = _embedding_onehot(ids_padded, embedding_weight,
                                     T=T, n_tiles=n_tiles,
                                     vmem_limit=vmem_limit)
    else:
        # TODO(synk): a vocab-tiled one-hot variant (accumulate over (T, TV)
        # chunks with pl.when init/finalize) could beat the row-DMA gather for
        # mid-size vocabularies; not needed at these sizes.
        out_flat = _embedding_dma_gather(ids_padded, embedding_weight,
                                         T=T, n_tiles=n_tiles)

    # TODO(synk): for E < 128, fold k = 128 // E tokens per output row to get a
    # lane-dense writeback (avoids masked vst on sub-128-lane output blocks).
    return out_flat[:n_tok].reshape(B, S, E)


if __name__ == "__main__":
    # Module hyperparameters (synthetic, deterministic, small).
    vocab_size = 64
    embed_size = 32
    batch_size = 2
    seq_len = 8

    key = jax.random.PRNGKey(0)
    k_emb, k_ids = jax.random.split(key)

    # nn.Embedding default init: weight ~ N(0, 1)
    embedding_weight = jax.random.normal(
        k_emb, (vocab_size, embed_size), dtype=jnp.float32
    )
    seq_ids = jax.random.randint(
        k_ids, (batch_size, seq_len), 0, vocab_size, dtype=jnp.int32
    )

    ref = embedding_weight[seq_ids]

    # Path A: small vocab -> VMEM-resident one-hot MXU gather (auto-selected).
    out_a = jax.block_until_ready(word_embedding_forward(seq_ids, embedding_weight))
    assert out_a.shape == (batch_size, seq_len, embed_size)
    assert jnp.allclose(out_a, ref, atol=1e-6), "one-hot path mismatch vs reference"

    # Path B: force the tiled manual-DMA gather (large-vocab fallback) so the
    # fallback is exercised too.
    out_b = jax.block_until_ready(
        word_embedding_forward(seq_ids, embedding_weight, vocab_mxu_threshold=0)
    )
    assert out_b.shape == (batch_size, seq_len, embed_size)
    assert jnp.allclose(out_b, ref, atol=1e-6), "dma-gather path mismatch vs reference"

    print("KERNEL_OK")
</pallas_src>

<mosaic_0001>
module attributes {stable_mosaic.version = 11 : i64} {
  func.func @_embedding_onehot_kernel(%arg0: i32, %arg1: memref<16x1xi32, #tpu.memory_space<vmem>>, %arg2: memref<64x32xf32, #tpu.memory_space<vmem>>, %arg3: memref<16x32xf32, #tpu.memory_space<vmem>>) attributes {dimension_semantics = [#tpu.dimension_semantics<parallel>], iteration_bounds = array<i64: 1>, scalar_prefetch = 0 : i64, scratch_operands = 0 : i64, tpu.core_type = #tpu.core_type<tc>, window_params = [{transform_indices = @transform_0, window_bounds = array<i64: 16, 1>}, {pipeline_mode = #tpu.pipeline_mode<synchronous>, transform_indices = @transform_1, window_bounds = array<i64: 64, 32>}, {transform_indices = @transform_2, window_bounds = array<i64: 16, 32>}]} {
    %c0 = arith.constant 0 : index
    %c0_0 = arith.constant 0 : index
    %0 = vector.load %arg1[%c0, %c0_0] : memref<16x1xi32, #tpu.memory_space<vmem>>, vector<16x1xi32>
    %1 = tpu.iota {dimensions = array<i32: 1>} : vector<16x64xi32>
    %c0_1 = arith.constant 0 : index
    %c0_2 = arith.constant 0 : index
    %2 = vector.load %arg2[%c0_1, %c0_2] : memref<64x32xf32, #tpu.memory_space<vmem>>, vector<64x32xf32>
    %3 = vector.broadcast %0 : vector<16x1xi32> to vector<16x64xi32>
    %4 = arith.cmpi eq, %3, %1 : vector<16x64xi32>
    %5 = arith.extui %4 : vector<16x64xi1> to vector<16x64xi32>
    %6 = arith.sitofp %5 : vector<16x64xi32> to vector<16x64xf32>
    %cst = arith.constant dense<0.000000e+00> : vector<16x32xf32>
    %7 = tpu.matmul %6, %2, %cst {dimension_numbers = #tpu.dot_dimension_numbers<[1], [0], [0], [1], [0, 0, 1, 1], [], []>, precision = #tpu.contract_precision<fp32>} : vector<16x64xf32>, vector<64x32xf32>, vector<16x32xf32> -> vector<16x32xf32>
    %c0_3 = arith.constant 0 : index
    %c0_4 = arith.constant 0 : index
    %8 = vector.load %arg3[%c0_3, %c0_4] : memref<16x32xf32, #tpu.memory_space<vmem>>, vector<16x32xf32>
    tpu.vector_store %arg3[%c0_3, %c0_4], %7 {strides = array<i32>} : memref<16x32xf32, #tpu.memory_space<vmem>>, vector<16x32xf32>,
    return
  }
  func.func @transform_0(%arg0: i32) -> (i32, i32) {
    %c0_i32 = arith.constant 0 : i32
    %c0_i32_0 = arith.constant 0 : i32
    return %arg0, %c0_i32 : i32, i32
  }
  func.func @transform_1(%arg0: i32) -> (i32, i32) {
    %c0_i32 = arith.constant 0 : i32
    %c0_i32_0 = arith.constant 0 : i32
    %c0_i32_1 = arith.constant 0 : i32
    return %c0_i32, %c0_i32_0 : i32, i32
  }
  func.func @transform_2(%arg0: i32) -> (i32, i32) {
    %c0_i32 = arith.constant 0 : i32
    %c0_i32_0 = arith.constant 0 : i32
    return %arg0, %c0_i32 : i32, i32
  }
}

</mosaic_0001>

<llo_original>
// kernel: tpu_custom_call.1
$region0: #{tpu_custom_call.1}
  #allocation0 [shape = 'u32[]', space=smem, size = 0x4, offset = 0x4, fixed_abs, tag = 'smem constant byte address 0x4 - core index']
  #allocation1 [shape = 'u32[72,128]{1,0:T(1,128)}', space=vmem, size = 0x9000, scoped, tag = 'internal scratch']
  %s0 = inlined_call_operand.vmem [shape: s32[16,1], index: 0, kind: input, shape index: {}]
  %s1 = inlined_call_operand.vmem [shape: f32[64,32], index: 1, kind: input, shape index: {}]
  %s2 = inlined_call_operand.hbm [shape: f32[16,32], index: 2, kind: output, shape index: {}]
  %s3 = sld [smem:[#allocation0]]
  $region18: #{tpu_custom_call.1} parent=0
    _
  %s5 = ssub.s32 1, %s3
  %s6 = scalar_select 0, %s5, %s3
  $region1: #{tpu_custom_call.1} parent=0
    #allocation2 [shape = 'u8[8192]{0}', space=vmem, size = 0x2000, scoped, tag = 'output window, operand 0, single buffered']
    #allocation3 [shape = 's32[1]{0}', space=sflag, size = 0x4, scoped, tag = 'scoped memory for tpu_custom_call.1']
    %7 = vsyncpa [#allocation3], 0
    // Predicated region
    $region2: #{tpu_custom_call.1} parent=1 // pred_check
      _
    $region3: #{tpu_custom_call.1} parent=1 // pred_check_branch
      %9 = sbr.rel (0) target = $region5
    $region4: #{tpu_custom_call.1} parent=1 // pred_region
      _
    $region5: #{tpu_custom_call.1} parent=1 // pred_fallthru
      _
    // Predicated region
    $region6: #{tpu_custom_call.1} parent=1 // pred_check
      _
    $region7: #{tpu_custom_call.1} parent=1 // pred_check_branch
      %11 = sbr.rel (0) target = $region9
    $region8: #{tpu_custom_call.1} parent=1 // pred_region
      _
    $region9: #{tpu_custom_call.1} parent=1 // pred_fallthru
      _
    %v12 = vld [vmem:[%s0] sm:$0xff]
    %v13 = vld [vmem:[%s0 + $0x8] sm:$0xff]
    %v14 = vlaneseq
    %v15 = vand.u32 %v14, 127
    %v16 = vld [vmem:[%s1] sm:$0xff]
    %v17 = vld [vmem:[%s1 + $0x8] sm:$0xff]
    %v18 = vld [vmem:[%s1 + $0x10] sm:$0xff]
    %v19 = vld [vmem:[%s1 + $0x18] sm:$0xff]
    %v20 = vld [vmem:[%s1 + $0x20] sm:$0xff]
    %v21 = vld [vmem:[%s1 + $0x28] sm:$0xff]
    %v22 = vld [vmem:[%s1 + $0x30] sm:$0xff]
    %v23 = vld [vmem:[%s1 + $0x38] sm:$0xff]
    %24 = vset.pattern.permute.xlu0 0
    %25 = vperm.xlu0 %24, %v12
    %v26 = vpop.permute.xlu0 %25
    %27 = vset.pattern.permute.xlu0 0
    %28 = vperm.xlu0 %27, %v13
    %v29 = vpop.permute.xlu0 %28
    %vm30 = vcmp.eq.s32.totalorder %v26, %v15
    %vm31 = vcmp.eq.s32.totalorder %v29, %v15
    %v32 = vsel %vm30, 1, 0
    %v33 = vsel %vm31, 1, 0
    %v34 = vcvt.s32.f32 %v32
    %v35 = vcvt.s32.f32 %v33
    %vm36 = vcmask 523264
    %v38 = vsel %vm36, %v34, 0
    %v41 = vsel %vm36, %v35, 0
    %43 = vmatpush.msra.mxu0 0.0
    %44 = vmatpush.msra.mxu0 0.0
    %45 = vmatpush.msra.mxu0 0.0
    %46 = vmatpush.msra.mxu0 0.0
    %47 = vmatpush.msra.mxu0 0.0
    %48 = vmatpush.msra.mxu0 0.0
    %49 = vmatpush.msra.mxu0 0.0
    %50 = vmatpush.msra.mxu0 0.0
    %v51 = vand.u32 %v23, 4294901760
    %52 = vmatpush.msra.mxu0 %v51
    %v53 = vand.u32 %v22, 4294901760
    %54 = vmatpush.msra.mxu0 %v53
    %v55 = vand.u32 %v21, 4294901760
    %56 = vmatpush.msra.mxu0 %v55
    %v57 = vand.u32 %v20, 4294901760
    %58 = vmatpush.msra.mxu0 %v57
    %v59 = vand.u32 %v19, 4294901760
    %60 = vmatpush.msra.mxu0 %v59
    %v61 = vand.u32 %v18, 4294901760
    %62 = vmatpush.msra.mxu0 %v61
    %v63 = vand.u32 %v17, 4294901760
    %64 = vmatpush.msra.mxu0 %v63
    %v65 = vand.u32 %v16, 4294901760
    %66 = vmatpush.msra.mxu0 %v65
    %v67 = vand.u32 %v38, 4294901760
    %v68 = vsub.f32 %v38, %v67
    %v69 = vand.u32 %v68, 4294901760
    %v70 = vsub.f32 %v68, %v69
    %v71 = vand.u32 %v70, 4294901760
    %72 = vmatmul.f32.gmra.mxu0 %v71
    %v73 = vpop.f32.mrf.mxu0
    %v74 = vadd.f32 0.0, %v73
    %v75 = vand.u32 %v41, 4294901760
    %v76 = vsub.f32 %v41, %v75
    %v77 = vand.u32 %v76, 4294901760
    %v78 = vsub.f32 %v76, %v77
    %v79 = vand.u32 %v78, 4294901760
    %80 = vmatmul.f32.gmra.mxu0 %v79
    %v81 = vpop.f32.mrf.mxu0
    %v82 = vadd.f32 0.0, %v81
    %83 = vdwg.mxu0
    %84 = vmatpush.msra.mxu0 0.0
    %85 = vmatpush.msra.mxu0 0.0
    %86 = vmatpush.msra.mxu0 0.0
    %87 = vmatpush.msra.mxu0 0.0
    %88 = vmatpush.msra.mxu0 0.0
    %89 = vmatpush.msra.mxu0 0.0
    %90 = vmatpush.msra.mxu0 0.0
    %91 = vmatpush.msra.mxu0 0.0
    %v92 = vand.u32 %v23, 4294901760
    %v93 = vsub.f32 %v23, %v92
    %v94 = vand.u32 %v93, 4294901760
    %v95 = vsub.f32 %v93, %v94
    %v96 = vand.u32 %v95, 4294901760
    %97 = vmatpush.msra.mxu0 %v96
    %v98 = vand.u32 %v22, 4294901760
    %v99 = vsub.f32 %v22, %v98
    %v100 = vand.u32 %v99, 4294901760
    %v101 = vsub.f32 %v99, %v100
    %v102 = vand.u32 %v101, 4294901760
    %103 = vmatpush.msra.mxu0 %v102
    %v104 = vand.u32 %v21, 4294901760
    %v105 = vsub.f32 %v21, %v104
    %v106 = vand.u32 %v105, 4294901760
    %v107 = vsub.f32 %v105, %v106
    %v108 = vand.u32 %v107, 4294901760
    %109 = vmatpush.msra.mxu0 %v108
    %v110 = vand.u32 %v20, 4294901760
    %v111 = vsub.f32 %v20, %v110
    %v112 = vand.u32 %v111, 4294901760
    %v113 = vsub.f32 %v111, %v112
    %v114 = vand.u32 %v113, 4294901760
    %115 = vmatpush.msra.mxu0 %v114
    %v116 = vand.u32 %v19, 4294901760
    %v117 = vsub.f32 %v19, %v116
    %v118 = vand.u32 %v117, 4294901760
    %v119 = vsub.f32 %v117, %v118
    %v120 = vand.u32 %v119, 4294901760
    %121 = vmatpush.msra.mxu0 %v120
    %v122 = vand.u32 %v18, 4294901760
    %v123 = vsub.f32 %v18, %v122
    %v124 = vand.u32 %v123, 4294901760
    %v125 = vsub.f32 %v123, %v124
    %v126 = vand.u32 %v125, 4294901760
    %127 = vmatpush.msra.mxu0 %v126
    %v128 = vand.u32 %v17, 4294901760
    %v129 = vsub.f32 %v17, %v128
    %v130 = vand.u32 %v129, 4294901760
    %v131 = vsub.f32 %v129, %v130
    %v132 = vand.u32 %v131, 4294901760
    %133 = vmatpush.msra.mxu0 %v132
    %v134 = vand.u32 %v16, 4294901760
    %v135 = vsub.f32 %v16, %v134
    %v136 = vand.u32 %v135, 4294901760
    %v137 = vsub.f32 %v135, %v136
    %v138 = vand.u32 %v137, 4294901760
    %139 = vmatpush.msra.mxu0 %v138
    %v140 = vand.u32 %v38, 4294901760
    %141 = vmatmul.f32.gmra.mxu0 %v140
    %v142 = vpop.f32.mrf.mxu0
    %v143 = vadd.f32 %v74, %v142
    %v144 = vand.u32 %v41, 4294901760
    %145 = vmatmul.f32.gmra.mxu0 %v144
    %v146 = vpop.f32.mrf.mxu0
    %v147 = vadd.f32 %v82, %v146
    %148 = vdwg.mxu0
    %149 = vmatpush.msra.mxu0 0.0
    %150 = vmatpush.msra.mxu0 0.0
    %151 = vmatpush.msra.mxu0 0.0
    %152 = vmatpush.msra.mxu0 0.0
    %153 = vmatpush.msra.mxu0 0.0
    %154 = vmatpush.msra.mxu0 0.0
    %155 = vmatpush.msra.mxu0 0.0
    %156 = vmatpush.msra.mxu0 0.0
    %v157 = vand.u32 %v23, 4294901760
    %v158 = vsub.f32 %v23, %v157
    %159 = vmatpush.msra.mxu0 %v158
    %v160 = vand.u32 %v22, 4294901760
    %v161 = vsub.f32 %v22, %v160
    %162 = vmatpush.msra.mxu0 %v161
    %v163 = vand.u32 %v21, 4294901760
    %v164 = vsub.f32 %v21, %v163
    %165 = vmatpush.msra.mxu0 %v164
    %v166 = vand.u32 %v20, 4294901760
    %v167 = vsub.f32 %v20, %v166
    %168 = vmatpush.msra.mxu0 %v167
    %v169 = vand.u32 %v19, 4294901760
    %v170 = vsub.f32 %v19, %v169
    %171 = vmatpush.msra.mxu0 %v170
    %v172 = vand.u32 %v18, 4294901760
    %v173 = vsub.f32 %v18, %v172
    %174 = vmatpush.msra.mxu0 %v173
    %v175 = vand.u32 %v17, 4294901760
    %v176 = vsub.f32 %v17, %v175
    %177 = vmatpush.msra.mxu0 %v176
    %v178 = vand.u32 %v16, 4294901760
    %v179 = vsub.f32 %v16, %v178
    %180 = vmatpush.msra.mxu0 %v179
    %v181 = vand.u32 %v38, 4294901760
    %v182 = vsub.f32 %v38, %v181
    %183 = vmatmul.f32.gmra.mxu0 %v182
    %v184 = vpop.f32.mrf.mxu0
    %v185 = vadd.f32 %v143, %v184
    %v186 = vand.u32 %v41, 4294901760
    %v187 = vsub.f32 %v41, %v186
    %188 = vmatmul.f32.gmra.mxu0 %v187
    %v189 = vpop.f32.mrf.mxu0
    %v190 = vadd.f32 %v147, %v189
    %191 = vdwg.mxu0
    %192 = vmatpush.msra.mxu0 0.0
    %193 = vmatpush.msra.mxu0 0.0
    %194 = vmatpush.msra.mxu0 0.0
    %195 = vmatpush.msra.mxu0 0.0
    %196 = vmatpush.msra.mxu0 0.0
    %197 = vmatpush.msra.mxu0 0.0
    %198 = vmatpush.msra.mxu0 0.0
    %199 = vmatpush.msra.mxu0 0.0
    %v200 = vand.u32 %v23, 4294901760
    %201 = vmatpush.msra.mxu0 %v200
    %v202 = vand.u32 %v22, 4294901760
    %203 = vmatpush.msra.mxu0 %v202
    %v204 = vand.u32 %v21, 4294901760
    %205 = vmatpush.msra.mxu0 %v204
    %v206 = vand.u32 %v20, 4294901760
    %207 = vmatpush.msra.mxu0 %v206
    %v208 = vand.u32 %v19, 4294901760
    %209 = vmatpush.msra.mxu0 %v208
    %v210 = vand.u32 %v18, 4294901760
    %211 = vmatpush.msra.mxu0 %v210
    %v212 = vand.u32 %v17, 4294901760
    %213 = vmatpush.msra.mxu0 %v212
    %v214 = vand.u32 %v16, 4294901760
    %215 = vmatpush.msra.mxu0 %v214
    %v216 = vand.u32 %v38, 4294901760
    %v217 = vsub.f32 %v38, %v216
    %v218 = vand.u32 %v217, 4294901760
    %219 = vmatmul.f32.gmra.mxu0 %v218
    %v220 = vpop.f32.mrf.mxu0
    %v221 = vadd.f32 %v185, %v220
    %v222 = vand.u32 %v41, 4294901760
    %v223 = vsub.f32 %v41, %v222
    %v224 = vand.u32 %v223, 4294901760
    %225 = vmatmul.f32.gmra.mxu0 %v224
    %v226 = vpop.f32.mrf.mxu0
    %v227 = vadd.f32 %v190, %v226
    %228 = vdwg.mxu0
    %229 = vmatpush.msra.mxu0 0.0
    %230 = vmatpush.msra.mxu0 0.0
    %231 = vmatpush.msra.mxu0 0.0
    %232 = vmatpush.msra.mxu0 0.0
    %233 = vmatpush.msra.mxu0 0.0
    %234 = vmatpush.msra.mxu0 0.0
    %235 = vmatpush.msra.mxu0 0.0
    %236 = vmatpush.msra.mxu0 0.0
    %v237 = vand.u32 %v23, 4294901760
    %v238 = vsub.f32 %v23, %v237
    %v239 = vand.u32 %v238, 4294901760
    %240 = vmatpush.msra.mxu0 %v239
    %v241 = vand.u32 %v22, 4294901760
    %v242 = vsub.f32 %v22, %v241
    %v243 = vand.u32 %v242, 4294901760
    %244 = vmatpush.msra.mxu0 %v243
    %v245 = vand.u32 %v21, 4294901760
    %v246 = vsub.f32 %v21, %v245
    %v247 = vand.u32 %v246, 4294901760
    %248 = vmatpush.msra.mxu0 %v247
    %v249 = vand.u32 %v20, 4294901760
    %v250 = vsub.f32 %v20, %v249
    %v251 = vand.u32 %v250, 4294901760
    %252 = vmatpush.msra.mxu0 %v251
    %v253 = vand.u32 %v19, 4294901760
    %v254 = vsub.f32 %v19, %v253
    %v255 = vand.u32 %v254, 4294901760
    %256 = vmatpush.msra.mxu0 %v255
    %v257 = vand.u32 %v18, 4294901760
    %v258 = vsub.f32 %v18, %v257
    %v259 = vand.u32 %v258, 4294901760
    %260 = vmatpush.msra.mxu0 %v259
    %v261 = vand.u32 %v17, 4294901760
    %v262 = vsub.f32 %v17, %v261
    %v263 = vand.u32 %v262, 4294901760
    %264 = vmatpush.msra.mxu0 %v263
    %v265 = vand.u32 %v16, 4294901760
    %v266 = vsub.f32 %v16, %v265
    %v267 = vand.u32 %v266, 4294901760
    %268 = vmatpush.msra.mxu0 %v267
    %v269 = vand.u32 %v38, 4294901760
    %270 = vmatmul.f32.gmra.mxu0 %v269
    %v271 = vpop.f32.mrf.mxu0
    %v272 = vadd.f32 %v221, %v271
    %v273 = vand.u32 %v41, 4294901760
    %274 = vmatmul.f32.gmra.mxu0 %v273
    %v275 = vpop.f32.mrf.mxu0
    %v276 = vadd.f32 %v227, %v275
    %277 = vdwg.mxu0
    %278 = vmatpush.msra.mxu0 0.0
    %279 = vmatpush.msra.mxu0 0.0
    %280 = vmatpush.msra.mxu0 0.0
    %281 = vmatpush.msra.mxu0 0.0
    %282 = vmatpush.msra.mxu0 0.0
    %283 = vmatpush.msra.mxu0 0.0
    %284 = vmatpush.msra.mxu0 0.0
    %285 = vmatpush.msra.mxu0 0.0
    %v286 = vand.u32 %v23, 4294901760
    %287 = vmatpush.msra.mxu0 %v286
    %v288 = vand.u32 %v22, 4294901760
    %289 = vmatpush.msra.mxu0 %v288
    %v290 = vand.u32 %v21, 4294901760
    %291 = vmatpush.msra.mxu0 %v290
    %v292 = vand.u32 %v20, 4294901760
    %293 = vmatpush.msra.mxu0 %v292
    %v294 = vand.u32 %v19, 4294901760
    %295 = vmatpush.msra.mxu0 %v294
    %v296 = vand.u32 %v18, 4294901760
    %297 = vmatpush.msra.mxu0 %v296
    %v298 = vand.u32 %v17, 4294901760
    %299 = vmatpush.msra.mxu0 %v298
    %v300 = vand.u32 %v16, 4294901760
    %301 = vmatpush.msra.mxu0 %v300
    %v302 = vand.u32 %v38, 4294901760
    %303 = vmatmul.f32.gmra.mxu0 %v302
    %v304 = vpop.f32.mrf.mxu0
    %v305 = vadd.f32 %v272, %v304
    %v306 = vand.u32 %v41, 4294901760
    %307 = vmatmul.f32.gmra.mxu0 %v306
    %v308 = vpop.f32.mrf.mxu0
    %v309 = vadd.f32 %v276, %v308
    %310 = vdwg.mxu0
    %vm311 = vcmask 261120
    %312 = vst.msk [vmem:[#allocation2] sm:$0xff] %vm311, %v305
    %313 = vst.msk [vmem:[#allocation2 + $0x8] sm:$0xff] %vm311, %v309
    // Predicated region
    $region10: #{tpu_custom_call.1} parent=1 // pred_check
      _
    $region11: #{tpu_custom_call.1} parent=1 // pred_check_branch
      %315 = sbr.rel (0) target = $region13
    $region12: #{tpu_custom_call.1} parent=1 // pred_region
      %317 = vsyncadd [#allocation3], 0
      %s318 = sshll.u32 [#allocation2], 4
      %s319 = int_to_ptr.vmem [resolvable:$true] %s318
      %s320 = sshll.u32 %s2, 4
      %s321 = int_to_ptr.hbm [resolvable:$true] %s320
      %326 = dma.vmem_to_hbm [thread:$0]  %s319, 256, %s321, [#allocation3], 128, 128, 8
    $region13: #{tpu_custom_call.1} parent=1 // pred_fallthru
      _
    // Predicated region
    $region14: #{tpu_custom_call.1} parent=1 // pred_check
      _
    $region15: #{tpu_custom_call.1} parent=1 // pred_check_branch
      %328 = sbr.rel (0) target = $region17
    $region16: #{tpu_custom_call.1} parent=1 // pred_region
      %330 = dma.done [#allocation3], 256
    $region17: #{tpu_custom_call.1} parent=1 // pred_fallthru
      _
    %331 = vsyncpa [#allocation3], 1

</llo_original>
